<compile_context>
chip_gen: v6e
topology: v6e:2x2x1
jax: 0.10.0
libtpu: 0.0.40
codegen_flags: <defaults>
</compile_context>

<pallas_src>
import math
import time

import jax
import jax.numpy as jnp
from jax.experimental import pallas as pl
from jax.experimental.pallas import tpu as pltpu


_MIB = 1024 * 1024


def _vmem_capacity_bytes() -> int:
    """Physical VMEM per core; fall back to the smallest generation (v7x, 64 MiB)."""
    try:
        return int(pltpu.get_tpu_info().vmem_capacity_bytes)
    except Exception:
        return 64 * _MIB


def _choose_head_group(num_heads: int, head_dim: int) -> int:
    """Smallest G dividing num_heads with (G*head_dim) % 128 == 0 (lane-dense blocks).

    Falls back to G = num_heads (one full block-diagonal block per layer) if no such
    G exists; that stays correct but stores may be partially masked.
    """
    for g in range(1, num_heads + 1):
        if num_heads % g == 0 and (g * head_dim) % 128 == 0:
            return g
    return num_heads


def _round_down8(x: int) -> int:
    return max(8, (x // 8) * 8)


def _choose_row_tile(n_rows, n_slabs, hd, in_bytes, out_bytes, tile_budget_bytes):
    """Row tile: as large as the VMEM budget allows, capped at 1024 rows (HBM-roofline
    knee is ~512 rows), and capped so the grid has >= 8 steps when n_rows is large
    enough — keeps both v7x TensorCores busy under dimension_semantics=('parallel',)."""
    per_row = n_slabs * 2 * hd * (in_bytes + out_bytes)     # x2 = double buffering
    vmem_rows = max(8, tile_budget_bytes // per_row)
    tile = min(1024, int(vmem_rows))
    min_eff, steps_target = 256, 8
    if n_rows > min_eff * steps_target:
        tile = min(tile, max(min_eff, -(-n_rows // steps_target)))
    tile = _round_down8(tile)
    if n_rows <= tile:
        return int(n_rows)                  # full extent: always a legal block shape
    return int(tile)


def _make_layer_kernel(n_groups: int, gdim: int):
    def kernel(w_ref, k_ref, v_ref, ko_ref, vo_ref):
        # w_ref : (1, HG, gdim, gdim) bf16, resident (constant index_map -> one DMA).
        # k/v   : (tile, HG*gdim) row slabs.  gdim is a multiple of 128 when head
        #         grouping succeeded, so every lane slice below is 128-aligned and
        #         every store is an unmasked, full-lane vst.
        for g in range(n_groups):                        # static unroll over head groups
            w_g = w_ref[0, g]                            # (gdim, gdim) bf16 weight block
            lo = g * gdim
            for x_ref, o_ref in ((k_ref, ko_ref), (v_ref, vo_ref)):
                x_g = x_ref[:, lo:lo + gdim].astype(jnp.bfloat16)   # bf16 -> full-rate MXU
                y = jnp.dot(x_g, w_g, preferred_element_type=jnp.float32)
                o_ref[:, lo:lo + gdim] = y.astype(o_ref.dtype)
    return kernel


def _zack_pallas_forward(w_all, xs, layer_ids):
    """
    w_all:     (num_layers, HG, gdim, gdim) bf16 grouped fused (comp@decomp) weights.
    xs:        tuple of 2*len(layer_ids) slabs, each (batch*seq, num_heads*head_dim),
               ordered [K_l0, V_l0, K_l1, V_l1, ...].
    layer_ids: static tuple of ints indexing w_all's first axis.
    Returns a tuple of slabs with the same shapes/dtypes as xs.
    """
    _, n_groups, gdim, _ = w_all.shape
    hd = n_groups * gdim
    w_layer_bytes = n_groups * gdim * gdim * jnp.dtype(w_all.dtype).itemsize

    # VMEM budgeting: v7x has 64 MiB/core, v5e/v6e have 128 MiB.  Raise the scoped
    # limit explicitly and spend most of it on row tiles (explicit headroom for
    # compiler-internal scratch + the double-buffered weight block).
    vmem_cap = _vmem_capacity_bytes()
    vmem_limit = int(min(vmem_cap * 3 // 4, 96 * _MIB))   # 48 MiB on v7x, 96 MiB on v5e/v6e
    headroom = 6 * _MIB
    tile_budget = max(_MIB, vmem_limit - headroom - 2 * w_layer_bytes)

    outs = []
    for idx, layer in enumerate(layer_ids):
        k = xs[2 * idx]
        v = xs[2 * idx + 1]
        n_rows, hd_x = k.shape
        assert hd_x == hd and v.shape == k.shape
        in_bytes = jnp.dtype(k.dtype).itemsize
        out_bytes = in_bytes

        tile = _choose_row_tile(n_rows, 2, hd, in_bytes, out_bytes, tile_budget)
        grid = (pl.cdiv(n_rows, tile),)

        w_spec = pl.BlockSpec((1, n_groups, gdim, gdim),
                              lambda t, L=layer: (L, 0, 0, 0))        # resident across grid
        row_spec = pl.BlockSpec((tile, hd), lambda t: (t, 0))

        flops = 4 * n_rows * hd * gdim                    # 2 slabs x 2*hd*gdim per row
        bytes_accessed = 2 * n_rows * hd * (in_bytes + out_bytes) + w_layer_bytes

        ko, vo = pl.pallas_call(
            _make_layer_kernel(n_groups, gdim),
            out_shape=(jax.ShapeDtypeStruct(k.shape, k.dtype),
                       jax.ShapeDtypeStruct(v.shape, v.dtype)),
            grid_spec=pltpu.PrefetchScalarGridSpec(
                num_scalar_prefetch=0,
                grid=grid,
                in_specs=[w_spec, row_spec, row_spec],
                out_specs=(row_spec, row_spec),
            ),
            compiler_params=pltpu.CompilerParams(
                dimension_semantics=("parallel",),        # row-tile axis -> v7x megacore
                vmem_limit_bytes=vmem_limit,
            ),
            cost_estimate=pl.CostEstimate(flops=flops, transcendentals=0,
                                          bytes_accessed=bytes_accessed),
        )(w_all, k, v)
        outs.append(ko)
        outs.append(vo)
    return tuple(outs)


_zack_forward_jit = jax.jit(_zack_pallas_forward, static_argnums=(2,))


class ZACKCompressorJAX:
    """JAX/Pallas port of ZACKCompressor.forward (compress + decompress of a KV cache)."""

    def __init__(self, num_layers, num_heads, head_dim,
                 target_compression_ratio=0.5, key=None):
        self.num_layers = num_layers
        self.num_heads = num_heads
        self.head_dim = head_dim
        self.target_compression_ratio = target_compression_ratio
        self.compressed_dim = max(1, int(head_dim * target_compression_ratio))

        key = key if key is not None else jax.random.PRNGKey(0)
        kc, kd = jax.random.split(key)
        # Per-(layer, head) compression / decompression matrices, torch-style init (f32).
        self.comp = (jax.random.normal(
            kc, (num_layers, num_heads, head_dim, self.compressed_dim),
            dtype=jnp.float32) / math.sqrt(head_dim))
        self.decomp = (jax.random.normal(
            kd, (num_layers, num_heads, self.compressed_dim, head_dim),
            dtype=jnp.float32) / math.sqrt(self.compressed_dim))

        # Head grouping: smallest G with (G*head_dim) % 128 == 0 so every weight
        # block / output store is 128-lane dense, at only Gx block-diag waste.
        self.head_group = _choose_head_group(num_heads, head_dim)
        g = self.head_group
        self.n_groups = num_heads // g
        self.group_dim = g * head_dim

        # Fuse compress->decompress per head IN F32 (W_h = C_h @ D_h), then lay the
        # G heads of each group out block-diagonally and cast to bf16 for the MXU.
        # NOTE: bf16-rounding the fused product adds error vs. the two-step f32
        # reference; fine at demo head_dim=32 with 5e-2 tolerance.
        # TODO(synk): re-check tolerance (or keep f32 weights / two-step matmul)
        #   at production head_dim.
        w_head = jnp.einsum("lhdc,lhce->lhde", self.comp, self.decomp)   # (L,H,Dh,Dh) f32
        w_grp = w_head.reshape(num_layers, self.n_groups, g, head_dim, head_dim)
        eye_g = jnp.eye(g, dtype=w_grp.dtype)
        w_bd = jnp.einsum("lgide,ij->lgidje", w_grp, eye_g)              # (L,HG,G,Dh,G,Dh)
        self.w_all = w_bd.reshape(num_layers, self.n_groups,
                                  self.group_dim, self.group_dim).astype(jnp.bfloat16)

        self.stats = {
            "compression_ratio": head_dim / self.compressed_dim,
            "memory_savings": 1 - self.compressed_dim / head_dim,
            "last_compression_time": 0,
        }

    def forward(self, key_cache, value_cache):
        start = time.time()
        layer_keys = list(key_cache.keys())
        layer_ids = tuple(int(l) for l in layer_keys)
        for l in layer_ids:
            assert 0 <= l < self.num_layers

        xs = []
        shapes = []
        for layer in layer_keys:
            k = key_cache[layer]
            v = value_cache[layer]
            b, s, h, dh = k.shape
            assert h == self.num_heads and dh == self.head_dim
            shapes.append((b, s, h, dh))
            xs.append(k.reshape(b * s, h * dh))   # free reshape: no HBM transpose pass
            xs.append(v.reshape(b * s, h * dh))

        outs = _zack_forward_jit(self.w_all, tuple(xs), layer_ids)
        jax.block_until_ready(outs)               # time actual execution, not dispatch

        dec_keys, dec_vals = {}, {}
        for i, layer in enumerate(layer_keys):
            b, s, h, dh = shapes[i]
            dec_keys[layer] = outs[2 * i].reshape(b, s, h, dh)
            dec_vals[layer] = outs[2 * i + 1].reshape(b, s, h, dh)
        self.stats["last_compression_time"] = time.time() - start
        return dec_keys, dec_vals, self.stats

    __call__ = forward

    # TODO(synk): optimize_compression_rates (Adam training loop over the matrices)
    # is training-time code outside the forward pass and is not ported.


if __name__ == "__main__":
    # Small, module-consistent shapes: 2 layers, 4 heads, head_dim=32, batch=2, seq=8.
    num_layers, num_heads, head_dim = 2, 4, 32
    batch, seq = 2, 8

    root = jax.random.PRNGKey(0)
    k_param, k_data = jax.random.split(root)

    compressor = ZACKCompressorJAX(num_layers, num_heads, head_dim,
                                   target_compression_ratio=0.5, key=k_param)

    key_cache, value_cache = {}, {}
    for layer in range(num_layers):
        k_data, kk, kv = jax.random.split(k_data, 3)
        # KV caches stored in bf16 (halves HBM traffic for this bandwidth-bound op).
        key_cache[layer] = jax.random.normal(
            kk, (batch, seq, num_heads, head_dim), dtype=jnp.float32).astype(jnp.bfloat16)
        value_cache[layer] = jax.random.normal(
            kv, (batch, seq, num_heads, head_dim), dtype=jnp.float32).astype(jnp.bfloat16)

    dec_keys, dec_vals, stats = compressor(key_cache, value_cache)

    for layer in range(num_layers):
        jax.block_until_ready(dec_keys[layer])
        jax.block_until_ready(dec_vals[layer])

    # Verify against a pure-JAX f32 reference of the same math (per-head compress
    # then decompress).  bf16 operands / bf16 output => loosened tolerance.
    for layer in range(num_layers):
        for name, cache, out in (("k", key_cache, dec_keys), ("v", value_cache, dec_vals)):
            ref = jnp.einsum("bshd,hdc,hce->bshe",
                             cache[layer].astype(jnp.float32),
                             compressor.comp[layer], compressor.decomp[layer])
            got = out[layer].astype(jnp.float32)
            assert out[layer].shape == cache[layer].shape, (layer, name)
            assert out[layer].dtype == cache[layer].dtype, (layer, name)
            assert bool(jnp.allclose(got, ref, atol=5e-2, rtol=5e-2)), (layer, name)

    print("KERNEL_OK")
</pallas_src>

<mosaic_0001>
module attributes {stable_mosaic.version = 11 : i64} {
  func.func @kernel(%arg0: i32, %arg1: memref<1x1x128x128xbf16, #tpu.memory_space<vmem>>, %arg2: memref<16x128xbf16, #tpu.memory_space<vmem>>, %arg3: memref<16x128xbf16, #tpu.memory_space<vmem>>, %arg4: memref<16x128xbf16, #tpu.memory_space<vmem>>, %arg5: memref<16x128xbf16, #tpu.memory_space<vmem>>) attributes {dimension_semantics = [#tpu.dimension_semantics<parallel>], iteration_bounds = array<i64: 1>, scalar_prefetch = 0 : i64, scratch_operands = 0 : i64, tpu.core_type = #tpu.core_type<tc>, window_params = [{transform_indices = @transform_0, window_bounds = array<i64: 1, 1, 128, 128>}, {transform_indices = @transform_1, window_bounds = array<i64: 16, 128>}, {transform_indices = @transform_2, window_bounds = array<i64: 16, 128>}, {transform_indices = @transform_3, window_bounds = array<i64: 16, 128>}, {transform_indices = @transform_4, window_bounds = array<i64: 16, 128>}]} {
    %c0 = arith.constant 0 : index
    %c0_0 = arith.constant 0 : index
    %c0_1 = arith.constant 0 : index
    %c0_2 = arith.constant 0 : index
    %0 = vector.load %arg1[%c0, %c0_0, %c0_1, %c0_2] : memref<1x1x128x128xbf16, #tpu.memory_space<vmem>>, vector<1x1x128x128xbf16>
    %1 = vector.shape_cast %0 : vector<1x1x128x128xbf16> to vector<128x128xbf16>
    %c0_3 = arith.constant 0 : index
    %c0_4 = arith.constant 0 : index
    %2 = vector.load %arg2[%c0_3, %c0_4] : memref<16x128xbf16, #tpu.memory_space<vmem>>, vector<16x128xbf16>
    %cst = arith.constant dense<0.000000e+00> : vector<16x128xf32>
    %3 = tpu.matmul %2, %1, %cst {dimension_numbers = #tpu.dot_dimension_numbers<[1], [0], [0], [1], [0, 0, 1, 1], [], []>} : vector<16x128xbf16>, vector<128x128xbf16>, vector<16x128xf32> -> vector<16x128xf32>
    %4 = arith.truncf %3 : vector<16x128xf32> to vector<16x128xbf16>
    %c0_5 = arith.constant 0 : index
    %c0_6 = arith.constant 0 : index
    %5 = vector.load %arg4[%c0_5, %c0_6] : memref<16x128xbf16, #tpu.memory_space<vmem>>, vector<16x128xbf16>
    tpu.vector_store %arg4[%c0_5, %c0_6], %4 {strides = array<i32>} : memref<16x128xbf16, #tpu.memory_space<vmem>>, vector<16x128xbf16>,
    %c0_7 = arith.constant 0 : index
    %c0_8 = arith.constant 0 : index
    %6 = vector.load %arg3[%c0_7, %c0_8] : memref<16x128xbf16, #tpu.memory_space<vmem>>, vector<16x128xbf16>
    %cst_9 = arith.constant dense<0.000000e+00> : vector<16x128xf32>
    %7 = tpu.matmul %6, %1, %cst_9 {dimension_numbers = #tpu.dot_dimension_numbers<[1], [0], [0], [1], [0, 0, 1, 1], [], []>} : vector<16x128xbf16>, vector<128x128xbf16>, vector<16x128xf32> -> vector<16x128xf32>
    %8 = arith.truncf %7 : vector<16x128xf32> to vector<16x128xbf16>
    %c0_10 = arith.constant 0 : index
    %c0_11 = arith.constant 0 : index
    %9 = vector.load %arg5[%c0_10, %c0_11] : memref<16x128xbf16, #tpu.memory_space<vmem>>, vector<16x128xbf16>
    tpu.vector_store %arg5[%c0_10, %c0_11], %8 {strides = array<i32>} : memref<16x128xbf16, #tpu.memory_space<vmem>>, vector<16x128xbf16>,
    return
  }
  func.func @transform_0(%arg0: i32) -> (i32, i32, i32, i32) {
    %c1_i32 = arith.constant 1 : i32
    %c0_i32 = arith.constant 0 : i32
    %c0_i32_0 = arith.constant 0 : i32
    %c0_i32_1 = arith.constant 0 : i32
    %c0_i32_2 = arith.constant 0 : i32
    return %c1_i32, %c0_i32, %c0_i32_0, %c0_i32_1 : i32, i32, i32, i32
  }
  func.func @transform_1(%arg0: i32) -> (i32, i32) {
    %c0_i32 = arith.constant 0 : i32
    %c0_i32_0 = arith.constant 0 : i32
    return %arg0, %c0_i32 : i32, i32
  }
  func.func @transform_2(%arg0: i32) -> (i32, i32) {
    %c0_i32 = arith.constant 0 : i32
    %c0_i32_0 = arith.constant 0 : i32
    return %arg0, %c0_i32 : i32, i32
  }
  func.func @transform_3(%arg0: i32) -> (i32, i32) {
    %c0_i32 = arith.constant 0 : i32
    %c0_i32_0 = arith.constant 0 : i32
    return %arg0, %c0_i32 : i32, i32
  }
  func.func @transform_4(%arg0: i32) -> (i32, i32) {
    %c0_i32 = arith.constant 0 : i32
    %c0_i32_0 = arith.constant 0 : i32
    return %arg0, %c0_i32 : i32, i32
  }
}

module attributes {stable_mosaic.version = 11 : i64} {
  func.func @kernel(%arg0: i32, %arg1: memref<1x1x128x128xbf16, #tpu.memory_space<vmem>>, %arg2: memref<16x128xbf16, #tpu.memory_space<vmem>>, %arg3: memref<16x128xbf16, #tpu.memory_space<vmem>>, %arg4: memref<16x128xbf16, #tpu.memory_space<vmem>>, %arg5: memref<16x128xbf16, #tpu.memory_space<vmem>>) attributes {dimension_semantics = [#tpu.dimension_semantics<parallel>], iteration_bounds = array<i64: 1>, scalar_prefetch = 0 : i64, scratch_operands = 0 : i64, tpu.core_type = #tpu.core_type<tc>, window_params = [{transform_indices = @transform_0, window_bounds = array<i64: 1, 1, 128, 128>}, {transform_indices = @transform_1, window_bounds = array<i64: 16, 128>}, {transform_indices = @transform_2, window_bounds = array<i64: 16, 128>}, {transform_indices = @transform_3, window_bounds = array<i64: 16, 128>}, {transform_indices = @transform_4, window_bounds = array<i64: 16, 128>}]} {
    %c0 = arith.constant 0 : index
    %c0_0 = arith.constant 0 : index
    %c0_1 = arith.constant 0 : index
    %c0_2 = arith.constant 0 : index
    %0 = vector.load %arg1[%c0, %c0_0, %c0_1, %c0_2] : memref<1x1x128x128xbf16, #tpu.memory_space<vmem>>, vector<1x1x128x128xbf16>
    %1 = vector.shape_cast %0 : vector<1x1x128x128xbf16> to vector<128x128xbf16>
    %c0_3 = arith.constant 0 : index
    %c0_4 = arith.constant 0 : index
    %2 = vector.load %arg2[%c0_3, %c0_4] : memref<16x128xbf16, #tpu.memory_space<vmem>>, vector<16x128xbf16>
    %cst = arith.constant dense<0.000000e+00> : vector<16x128xf32>
    %3 = tpu.matmul %2, %1, %cst {dimension_numbers = #tpu.dot_dimension_numbers<[1], [0], [0], [1], [0, 0, 1, 1], [], []>} : vector<16x128xbf16>, vector<128x128xbf16>, vector<16x128xf32> -> vector<16x128xf32>
    %4 = arith.truncf %3 : vector<16x128xf32> to vector<16x128xbf16>
    %c0_5 = arith.constant 0 : index
    %c0_6 = arith.constant 0 : index
    %5 = vector.load %arg4[%c0_5, %c0_6] : memref<16x128xbf16, #tpu.memory_space<vmem>>, vector<16x128xbf16>
    tpu.vector_store %arg4[%c0_5, %c0_6], %4 {strides = array<i32>} : memref<16x128xbf16, #tpu.memory_space<vmem>>, vector<16x128xbf16>,
    %c0_7 = arith.constant 0 : index
    %c0_8 = arith.constant 0 : index
    %6 = vector.load %arg3[%c0_7, %c0_8] : memref<16x128xbf16, #tpu.memory_space<vmem>>, vector<16x128xbf16>
    %cst_9 = arith.constant dense<0.000000e+00> : vector<16x128xf32>
    %7 = tpu.matmul %6, %1, %cst_9 {dimension_numbers = #tpu.dot_dimension_numbers<[1], [0], [0], [1], [0, 0, 1, 1], [], []>} : vector<16x128xbf16>, vector<128x128xbf16>, vector<16x128xf32> -> vector<16x128xf32>
    %8 = arith.truncf %7 : vector<16x128xf32> to vector<16x128xbf16>
    %c0_10 = arith.constant 0 : index
    %c0_11 = arith.constant 0 : index
    %9 = vector.load %arg5[%c0_10, %c0_11] : memref<16x128xbf16, #tpu.memory_space<vmem>>, vector<16x128xbf16>
    tpu.vector_store %arg5[%c0_10, %c0_11], %8 {strides = array<i32>} : memref<16x128xbf16, #tpu.memory_space<vmem>>, vector<16x128xbf16>,
    return
  }
  func.func @transform_0(%arg0: i32) -> (i32, i32, i32, i32) {
    %c0_i32 = arith.constant 0 : i32
    %c0_i32_0 = arith.constant 0 : i32
    %c0_i32_1 = arith.constant 0 : i32
    %c0_i32_2 = arith.constant 0 : i32
    %c0_i32_3 = arith.constant 0 : i32
    return %c0_i32, %c0_i32_0, %c0_i32_1, %c0_i32_2 : i32, i32, i32, i32
  }
  func.func @transform_1(%arg0: i32) -> (i32, i32) {
    %c0_i32 = arith.constant 0 : i32
    %c0_i32_0 = arith.constant 0 : i32
    return %arg0, %c0_i32 : i32, i32
  }
  func.func @transform_2(%arg0: i32) -> (i32, i32) {
    %c0_i32 = arith.constant 0 : i32
    %c0_i32_0 = arith.constant 0 : i32
    return %arg0, %c0_i32 : i32, i32
  }
  func.func @transform_3(%arg0: i32) -> (i32, i32) {
    %c0_i32 = arith.constant 0 : i32
    %c0_i32_0 = arith.constant 0 : i32
    return %arg0, %c0_i32 : i32, i32
  }
  func.func @transform_4(%arg0: i32) -> (i32, i32) {
    %c0_i32 = arith.constant 0 : i32
    %c0_i32_0 = arith.constant 0 : i32
    return %arg0, %c0_i32 : i32, i32
  }
}

</mosaic_0001>

<llo_original>
// kernel: _zack_pallas_forward.2
$region0: #{_zack_pallas_forward.2}
  #allocation0 [shape = 'u32[]', space=smem, size = 0x4, offset = 0x4, fixed_abs, tag = 'smem constant byte address 0x4 - core index']
  #allocation1 [shape = 'u32[144,128]{1,0:T(1,128)}', space=vmem, size = 0x12000, scoped, tag = 'internal scratch']
  %s0 = inlined_call_operand.hbm [shape: bf16[2,1,128,128], index: 0, kind: input, shape index: {}]
  %s1 = inlined_call_operand.hbm [shape: bf16[16,128], index: 1, kind: input, shape index: {}]
  %s2 = inlined_call_operand.hbm [shape: bf16[16,128], index: 2, kind: input, shape index: {}]
  %s3 = inlined_call_operand.hbm [shape: bf16[16,128], index: 3, kind: output, shape index: {0}]
  %s4 = inlined_call_operand.hbm [shape: bf16[16,128], index: 4, kind: output, shape index: {1}]
  %5 = xla_tuple %s3, %s4
  %s6 = sld [smem:[#allocation0]]
  $region42: #{_zack_pallas_forward.2} parent=0
    _
  %s8 = ssub.s32 1, %s6
  %s9 = scalar_select 0, %s8, %s6
  $region1: #{_zack_pallas_forward.2} parent=0
    #allocation2 [shape = 'u8[32768]{0}', space=vmem, size = 0x8000, scoped, tag = 'input window, operand 0, single buffered']
    #allocation3 [shape = 's32[1]{0}', space=sflag, size = 0x4, scoped, tag = 'scoped memory for _zack_pallas_forward.2']
    #allocation4 [shape = 's32[1]{0}', space=sflag, size = 0x4, scoped, tag = 'scoped memory for _zack_pallas_forward.2']
    #allocation5 [shape = 'u8[4096]{0}', space=vmem, size = 0x1000, scoped, tag = 'input window, operand 1, single buffered']
    #allocation6 [shape = 's32[1]{0}', space=sflag, size = 0x4, scoped, tag = 'scoped memory for _zack_pallas_forward.2']
    #allocation7 [shape = 'u8[4096]{0}', space=vmem, size = 0x1000, scoped, tag = 'input window, operand 2, single buffered']
    #allocation8 [shape = 'u8[4096]{0}', space=vmem, size = 0x1000, scoped, tag = 'output window, operand 0, single buffered']
    #allocation9 [shape = 'u8[4096]{0}', space=vmem, size = 0x1000, scoped, tag = 'output window, operand 1, single buffered']
    #allocation10 [shape = 's32[1]{0}', space=sflag, size = 0x4, scoped, tag = 'scoped memory for _zack_pallas_forward.2']
    %10 = vsyncpa [#allocation3], 0
    %11 = vsyncpa [#allocation6], 0
    %12 = vsyncpa [#allocation4], 0
    %13 = vsyncpa [#allocation10], 0
    // Predicated region
    $region2: #{_zack_pallas_forward.2} parent=1 // pred_check
      _
    $region3: #{_zack_pallas_forward.2} parent=1 // pred_check_branch
      %15 = sbr.rel (0) target = $region5
    $region4: #{_zack_pallas_forward.2} parent=1 // pred_region
      %s17 = ssub.s32 1024, 1024
      %18 = vsyncadd [#allocation3], %s17
      %s19 = sshll.u32 [#allocation2], 4
      %s20 = int_to_ptr.vmem [resolvable:$true] %s19
      %25 = dma.hbm_to_vmem [thread:$0]  %s0, 1024, %s20, [#allocation3], 64, 64, 4
    $region5: #{_zack_pallas_forward.2} parent=1 // pred_fallthru
      _
    // Predicated region
    $region6: #{_zack_pallas_forward.2} parent=1 // pred_check
      _
    $region7: #{_zack_pallas_forward.2} parent=1 // pred_check_branch
      %27 = sbr.rel (0) target = $region9
    $region8: #{_zack_pallas_forward.2} parent=1 // pred_region
      %s29 = ssub.s32 128, 128
      %30 = vsyncadd [#allocation6], %s29
      %s31 = sshll.u32 [#allocation5], 4
      %s32 = int_to_ptr.vmem [resolvable:$true] %s31
      %37 = dma.hbm_to_vmem [thread:$0]  %s1, 128, %s32, [#allocation6], 64, 64, 4
    $region9: #{_zack_pallas_forward.2} parent=1 // pred_fallthru
      _
    // Predicated region
    $region10: #{_zack_pallas_forward.2} parent=1 // pred_check
      _
    $region11: #{_zack_pallas_forward.2} parent=1 // pred_check_branch
      %39 = sbr.rel (0) target = $region13
    $region12: #{_zack_pallas_forward.2} parent=1 // pred_region
      %s41 = ssub.s32 128, 128
      %42 = vsyncadd [#allocation6], %s41
      %s43 = sshll.u32 [#allocation7], 4
      %s44 = int_to_ptr.vmem [resolvable:$true] %s43
      %49 = dma.hbm_to_vmem [thread:$0]  %s2, 128, %s44, [#allocation6], 64, 64, 4
    $region13: #{_zack_pallas_forward.2} parent=1 // pred_fallthru
      _
    // Predicated region
    $region14: #{_zack_pallas_forward.2} parent=1 // pred_check
      _
    $region15: #{_zack_pallas_forward.2} parent=1 // pred_check_branch
      %51 = sbr.rel (0) target = $region17
    $region16: #{_zack_pallas_forward.2} parent=1 // pred_region
      %52 = dma.done [#allocation3], 1024
    $region17: #{_zack_pallas_forward.2} parent=1 // pred_fallthru
      _
    // Predicated region
    $region18: #{_zack_pallas_forward.2} parent=1 // pred_check
      _
    $region19: #{_zack_pallas_forward.2} parent=1 // pred_check_branch
      %54 = sbr.rel (0) target = $region21
    $region20: #{_zack_pallas_forward.2} parent=1 // pred_region
      %55 = dma.done [#allocation6], 128
    $region21: #{_zack_pallas_forward.2} parent=1 // pred_fallthru
      _
    // Predicated region
    $region22: #{_zack_pallas_forward.2} parent=1 // pred_check
      _
    $region23: #{_zack_pallas_forward.2} parent=1 // pred_check_branch
      %57 = sbr.rel (0) target = $region25
    $region24: #{_zack_pallas_forward.2} parent=1 // pred_region
      %58 = dma.done [#allocation6], 128
    $region25: #{_zack_pallas_forward.2} parent=1 // pred_fallthru
      _
    %v60 = vld [vmem:[#allocation2] sm:$0xf]
    %v61 = vld [vmem:[#allocation2 + $0x4] sm:$0xf]
    %v62 = vld [vmem:[#allocation2 + $0x8] sm:$0xf]
    %v63 = vld [vmem:[#allocation2 + $0xc] sm:$0xf]
    %v64 = vld [vmem:[#allocation2 + $0x10] sm:$0xf]
    %v65 = vld [vmem:[#allocation2 + $0x14] sm:$0xf]
    %v66 = vld [vmem:[#allocation2 + $0x18] sm:$0xf]
    %v67 = vld [vmem:[#allocation2 + $0x1c] sm:$0xf]
    %v68 = vld [vmem:[#allocation2 + $0x20] sm:$0xf]
    %v69 = vld [vmem:[#allocation2 + $0x24] sm:$0xf]
    %v70 = vld [vmem:[#allocation2 + $0x28] sm:$0xf]
    %v71 = vld [vmem:[#allocation2 + $0x2c] sm:$0xf]
    %v72 = vld [vmem:[#allocation2 + $0x30] sm:$0xf]
    %v73 = vld [vmem:[#allocation2 + $0x34] sm:$0xf]
    %v74 = vld [vmem:[#allocation2 + $0x38] sm:$0xf]
    %v75 = vld [vmem:[#allocation2 + $0x3c] sm:$0xf]
    %v76 = vld [vmem:[#allocation5] sm:$0xf]
    %v77 = vld [vmem:[#allocation5 + $0x4] sm:$0xf]
    %v80 = vunpack.c.l.b16 %v76
    %v81 = vunpack.c.l.b16 %v77
    %v82 = vpack.c.b16 %v81, %v80
    %v100 = vunpack.c.l.b16 %v60
    %v101 = vunpack.c.l.b16 %v61
    %v102 = vunpack.c.l.b16 %v62
    %v103 = vunpack.c.l.b16 %v63
    %v104 = vunpack.c.l.b16 %v64
    %v105 = vunpack.c.l.b16 %v65
    %v106 = vunpack.c.l.b16 %v66
    %v107 = vunpack.c.l.b16 %v67
    %v108 = vunpack.c.l.b16 %v68
    %v109 = vunpack.c.l.b16 %v69
    %v110 = vunpack.c.l.b16 %v70
    %v111 = vunpack.c.l.b16 %v71
    %v112 = vunpack.c.l.b16 %v72
    %v113 = vunpack.c.l.b16 %v73
    %v114 = vunpack.c.l.b16 %v74
    %v115 = vunpack.c.l.b16 %v75
    %v116 = vpack.c.b16 %v101, %v100
    %v117 = vpack.c.b16 %v103, %v102
    %v118 = vpack.c.b16 %v105, %v104
    %v119 = vpack.c.b16 %v107, %v106
    %v120 = vpack.c.b16 %v109, %v108
    %v121 = vpack.c.b16 %v111, %v110
    %v122 = vpack.c.b16 %v113, %v112
    %v123 = vpack.c.b16 %v115, %v114
    %132 = vmatprep.subr.bf16.mxu0 0
    %133 = vmatpush1.bf16.msra.mxu0 %v123
    %134 = vmatprep.subr.bf16.mxu0 0
    %135 = vmatpush1.bf16.msra.mxu0 %v122
    %136 = vmatprep.subr.bf16.mxu0 0
    %137 = vmatpush1.bf16.msra.mxu0 %v121
    %138 = vmatprep.subr.bf16.mxu0 0
    %139 = vmatpush1.bf16.msra.mxu0 %v120
    %140 = vmatprep.subr.bf16.mxu0 0
    %141 = vmatpush1.bf16.msra.mxu0 %v119
    %142 = vmatprep.subr.bf16.mxu0 0
    %143 = vmatpush1.bf16.msra.mxu0 %v118
    %144 = vmatprep.subr.bf16.mxu0 0
    %145 = vmatpush1.bf16.msra.mxu0 %v117
    %146 = vmatprep.subr.bf16.mxu0 0
    %147 = vmatpush1.bf16.msra.mxu0 %v116
    %148 = vmatprep.subr.bf16.mxu0 0
    %149 = vmatpush2.bf16.msra.mxu0 0
    %150 = vmatprep.subr.bf16.mxu0 0
    %151 = vmatpush2.bf16.msra.mxu0 0
    %152 = vmatprep.subr.bf16.mxu0 0
    %153 = vmatpush2.bf16.msra.mxu0 0
    %154 = vmatprep.subr.bf16.mxu0 0
    %155 = vmatpush2.bf16.msra.mxu0 0
    %156 = vmatprep.subr.bf16.mxu0 0
    %157 = vmatpush2.bf16.msra.mxu0 0
    %158 = vmatprep.subr.bf16.mxu0 0
    %159 = vmatpush2.bf16.msra.mxu0 0
    %160 = vmatprep.subr.bf16.mxu0 0
    %161 = vmatpush2.bf16.msra.mxu0 0
    %162 = vmatprep.subr.bf16.mxu0 0
    %163 = vmatpush2.bf16.msra.mxu0 0
    %164 = vmatprep.mubr.bf16.mxu0 0
    %165 = vmatmul.mubr.bf16.gmra.mxu0 %v82
    %v166 = vpop.f32.mrf.mxu0
    %v167 = vadd.f32 0.0, %v166
    %v168 = vpop.f32.mrf.mxu0
    %v169 = vpop.f32.mrf.mxu0
    %v170 = vadd.f32 0.0, %v169
    %v171 = vpop.f32.mrf.mxu0
    %172 = vdwg.mxu0
    %v173 = vpack.c.bf16 %v170, %v167
    %v175 = vunpack.c.l.b16 %v173
    %v176 = vunpack.c.h.b16 %v173
    %v177 = vpack.c.b16 %v175, %v175
    %v178 = vpack.c.b16 %v176, %v176
    %181 = vst [vmem:[#allocation8] sm:$0xf] %v177
    %182 = vst [vmem:[#allocation8 + $0x4] sm:$0xf] %v178
    %v183 = vld [vmem:[#allocation7] sm:$0xf]
    %v184 = vld [vmem:[#allocation7 + $0x4] sm:$0xf]
    %v187 = vunpack.c.l.b16 %v183
    %v188 = vunpack.c.l.b16 %v184
    %v189 = vpack.c.b16 %v188, %v187
    %191 = vmatprep.subr.bf16.mxu0 0
    %192 = vmatpush1.bf16.msra.mxu0 %v123
    %193 = vmatprep.subr.bf16.mxu0 0
    %194 = vmatpush1.bf16.msra.mxu0 %v122
    %195 = vmatprep.subr.bf16.mxu0 0
    %196 = vmatpush1.bf16.msra.mxu0 %v121
    %197 = vmatprep.subr.bf16.mxu0 0
    %198 = vmatpush1.bf16.msra.mxu0 %v120
    %199 = vmatprep.subr.bf16.mxu0 0
    %200 = vmatpush1.bf16.msra.mxu0 %v119
    %201 = vmatprep.subr.bf16.mxu0 0
    %202 = vmatpush1.bf16.msra.mxu0 %v118
    %203 = vmatprep.subr.bf16.mxu0 0
    %204 = vmatpush1.bf16.msra.mxu0 %v117
    %205 = vmatprep.subr.bf16.mxu0 0
    %206 = vmatpush1.bf16.msra.mxu0 %v116
    %207 = vmatprep.subr.bf16.mxu0 0
    %208 = vmatpush2.bf16.msra.mxu0 0
    %209 = vmatprep.subr.bf16.mxu0 0
    %210 = vmatpush2.bf16.msra.mxu0 0
    %211 = vmatprep.subr.bf16.mxu0 0
    %212 = vmatpush2.bf16.msra.mxu0 0
    %213 = vmatprep.subr.bf16.mxu0 0
    %214 = vmatpush2.bf16.msra.mxu0 0
    %215 = vmatprep.subr.bf16.mxu0 0
    %216 = vmatpush2.bf16.msra.mxu0 0
    %217 = vmatprep.subr.bf16.mxu0 0
    %218 = vmatpush2.bf16.msra.mxu0 0
    %219 = vmatprep.subr.bf16.mxu0 0
    %220 = vmatpush2.bf16.msra.mxu0 0
    %221 = vmatprep.subr.bf16.mxu0 0
    %222 = vmatpush2.bf16.msra.mxu0 0
    %223 = vmatprep.mubr.bf16.mxu0 0
    %224 = vmatmul.mubr.bf16.gmra.mxu0 %v189
    %v225 = vpop.f32.mrf.mxu0
    %v226 = vadd.f32 0.0, %v225
    %v227 = vpop.f32.mrf.mxu0
    %v228 = vpop.f32.mrf.mxu0
    %v229 = vadd.f32 0.0, %v228
    %v230 = vpop.f32.mrf.mxu0
    %231 = vdwg.mxu0
    %v232 = vpack.c.bf16 %v229, %v226
    %v234 = vunpack.c.l.b16 %v232
    %v235 = vunpack.c.h.b16 %v232
    %v236 = vpack.c.b16 %v234, %v234
    %v237 = vpack.c.b16 %v235, %v235
    %240 = vst [vmem:[#allocation9] sm:$0xf] %v236
    %241 = vst [vmem:[#allocation9 + $0x4] sm:$0xf] %v237
    // Predicated region
    $region26: #{_zack_pallas_forward.2} parent=1 // pred_check
      _
    $region27: #{_zack_pallas_forward.2} parent=1 // pred_check_branch
      %243 = sbr.rel (0) target = $region29
    $region28: #{_zack_pallas_forward.2} parent=1 // pred_region
      %s245 = ssub.s32 128, 128
      %246 = vsyncadd [#allocation4], %s245
      %s247 = sshll.u32 [#allocation8], 4
      %s248 = int_to_ptr.vmem [resolvable:$true] %s247
      %253 = dma.vmem_to_hbm [thread:$0]  %s248, 128, %s3, [#allocation4], 64, 64, 4
    $region29: #{_zack_pallas_forward.2} parent=1 // pred_fallthru
      _
    // Predicated region
    $region30: #{_zack_pallas_forward.2} parent=1 // pred_check
      _
    $region31: #{_zack_pallas_forward.2} parent=1 // pred_check_branch
      %255 = sbr.rel (0) target = $region33
    $region32: #{_zack_pallas_forward.2} parent=1 // pred_region
      %s257 = ssub.s32 128, 128
      %258 = vsyncadd [#allocation10], %s257
      %s259 = sshll.u32 [#allocation9], 4
      %s260 = int_to_ptr.vmem [resolvable:$true] %s259
      %265 = dma.vmem_to_hbm [thread:$0]  %s260, 128, %s4, [#allocation10], 64, 64, 4
    $region33: #{_zack_pallas_forward.2} parent=1 // pred_fallthru
      _
    // Predicated region
    $region34: #{_zack_pallas_forward.2} parent=1 // pred_check
      _
    $region35: #{_zack_pallas_forward.2} parent=1 // pred_check_branch
      %267 = sbr.rel (0) target = $region37
    $region36: #{_zack_pallas_forward.2} parent=1 // pred_region
      %268 = dma.done [#allocation4], 128
    $region37: #{_zack_pallas_forward.2} parent=1 // pred_fallthru
      _
    // Predicated region
    $region38: #{_zack_pallas_forward.2} parent=1 // pred_check
      _
    $region39: #{_zack_pallas_forward.2} parent=1 // pred_check_branch
      %270 = sbr.rel (0) target = $region41
    $region40: #{_zack_pallas_forward.2} parent=1 // pred_region
      %271 = dma.done [#allocation10], 128
    $region41: #{_zack_pallas_forward.2} parent=1 // pred_fallthru
      _
    %272 = vsyncpa [#allocation3], 1
    %273 = vsyncpa [#allocation6], 1
    %274 = vsyncpa [#allocation4], 1
    %275 = vsyncpa [#allocation10], 1

// kernel: _zack_pallas_forward.3
$region0: #{_zack_pallas_forward.3}
  #allocation0 [shape = 'u32[]', space=smem, size = 0x4, offset = 0x4, fixed_abs, tag = 'smem constant byte address 0x4 - core index']
  #allocation1 [shape = 'u32[144,128]{1,0:T(1,128)}', space=vmem, size = 0x12000, scoped, tag = 'internal scratch']
  %s0 = inlined_call_operand.vmem [shape: bf16[2,1,128,128], index: 0, kind: input, shape index: {}]
  %s1 = inlined_call_operand.vmem [shape: bf16[16,128], index: 1, kind: input, shape index: {}]
  %s2 = inlined_call_operand.vmem [shape: bf16[16,128], index: 2, kind: input, shape index: {}]
  %s3 = inlined_call_operand.hbm [shape: bf16[16,128], index: 3, kind: output, shape index: {0}]
  %s4 = inlined_call_operand.hbm [shape: bf16[16,128], index: 4, kind: output, shape index: {1}]
  %5 = xla_tuple %s3, %s4
  %s6 = sld [smem:[#allocation0]]
  $region30: #{_zack_pallas_forward.3} parent=0
    _
  %s8 = ssub.s32 1, %s6
  %s9 = scalar_select 0, %s8, %s6
  $region1: #{_zack_pallas_forward.3} parent=0
    #allocation2 [shape = 'u8[4096]{0}', space=vmem, size = 0x1000, scoped, tag = 'output window, operand 0, single buffered']
    #allocation3 [shape = 's32[1]{0}', space=sflag, size = 0x4, scoped, tag = 'scoped memory for _zack_pallas_forward.3']
    #allocation4 [shape = 'u8[4096]{0}', space=vmem, size = 0x1000, scoped, tag = 'output window, operand 1, single buffered']
    #allocation5 [shape = 's32[1]{0}', space=sflag, size = 0x4, scoped, tag = 'scoped memory for _zack_pallas_forward.3']
    %10 = vsyncpa [#allocation3], 0
    %11 = vsyncpa [#allocation5], 0
    // Predicated region
    $region2: #{_zack_pallas_forward.3} parent=1 // pred_check
      _
    $region3: #{_zack_pallas_forward.3} parent=1 // pred_check_branch
      %13 = sbr.rel (0) target = $region5
    $region4: #{_zack_pallas_forward.3} parent=1 // pred_region
      %s14 = scalar_lea.vmem %s0, 64
    $region5: #{_zack_pallas_forward.3} parent=1 // pred_fallthru
      _
    // Predicated region
    $region6: #{_zack_pallas_forward.3} parent=1 // pred_check
      _
    $region7: #{_zack_pallas_forward.3} parent=1 // pred_check_branch
      %16 = sbr.rel (0) target = $region9
    $region8: #{_zack_pallas_forward.3} parent=1 // pred_region
      _
    $region9: #{_zack_pallas_forward.3} parent=1 // pred_fallthru
      _
    // Predicated region
    $region10: #{_zack_pallas_forward.3} parent=1 // pred_check
      _
    $region11: #{_zack_pallas_forward.3} parent=1 // pred_check_branch
      %18 = sbr.rel (0) target = $region13
    $region12: #{_zack_pallas_forward.3} parent=1 // pred_region
      _
    $region13: #{_zack_pallas_forward.3} parent=1 // pred_fallthru
      _
    %s19 = scalar_lea.vmem %s0, 64
    %s20 = scalar_lea.vmem %s0, 64
    %v22 = vld [vmem:[%s20] sm:$0xf]
    %v23 = vld [vmem:[%s20 + $0x4] sm:$0xf]
    %v24 = vld [vmem:[%s20 + $0x8] sm:$0xf]
    %v25 = vld [vmem:[%s20 + $0xc] sm:$0xf]
    %v26 = vld [vmem:[%s20 + $0x10] sm:$0xf]
    %v27 = vld [vmem:[%s20 + $0x14] sm:$0xf]
    %v28 = vld [vmem:[%s20 + $0x18] sm:$0xf]
    %v29 = vld [vmem:[%s20 + $0x1c] sm:$0xf]
    %v30 = vld [vmem:[%s20 + $0x20] sm:$0xf]
    %v31 = vld [vmem:[%s20 + $0x24] sm:$0xf]
    %v32 = vld [vmem:[%s20 + $0x28] sm:$0xf]
    %v33 = vld [vmem:[%s20 + $0x2c] sm:$0xf]
    %v34 = vld [vmem:[%s20 + $0x30] sm:$0xf]
    %v35 = vld [vmem:[%s20 + $0x34] sm:$0xf]
    %v36 = vld [vmem:[%s20 + $0x38] sm:$0xf]
    %v37 = vld [vmem:[%s20 + $0x3c] sm:$0xf]
    %v38 = vld [vmem:[%s1] sm:$0xf]
    %v39 = vld [vmem:[%s1 + $0x4] sm:$0xf]
    %v42 = vunpack.c.l.b16 %v38
    %v43 = vunpack.c.l.b16 %v39
    %v44 = vpack.c.b16 %v43, %v42
    %v62 = vunpack.c.l.b16 %v22
    %v63 = vunpack.c.l.b16 %v23
    %v64 = vunpack.c.l.b16 %v24
    %v65 = vunpack.c.l.b16 %v25
    %v66 = vunpack.c.l.b16 %v26
    %v67 = vunpack.c.l.b16 %v27
    %v68 = vunpack.c.l.b16 %v28
    %v69 = vunpack.c.l.b16 %v29
    %v70 = vunpack.c.l.b16 %v30
    %v71 = vunpack.c.l.b16 %v31
    %v72 = vunpack.c.l.b16 %v32
    %v73 = vunpack.c.l.b16 %v33
    %v74 = vunpack.c.l.b16 %v34
    %v75 = vunpack.c.l.b16 %v35
    %v76 = vunpack.c.l.b16 %v36
    %v77 = vunpack.c.l.b16 %v37
    %v78 = vpack.c.b16 %v63, %v62
    %v79 = vpack.c.b16 %v65, %v64
    %v80 = vpack.c.b16 %v67, %v66
    %v81 = vpack.c.b16 %v69, %v68
    %v82 = vpack.c.b16 %v71, %v70
    %v83 = vpack.c.b16 %v73, %v72
    %v84 = vpack.c.b16 %v75, %v74
    %v85 = vpack.c.b16 %v77, %v76
    %94 = vmatprep.subr.bf16.mxu0 0
    %95 = vmatpush1.bf16.msra.mxu0 %v85
    %96 = vmatprep.subr.bf16.mxu0 0
    %97 = vmatpush1.bf16.msra.mxu0 %v84
    %98 = vmatprep.subr.bf16.mxu0 0
    %99 = vmatpush1.bf16.msra.mxu0 %v83
    %100 = vmatprep.subr.bf16.mxu0 0
    %101 = vmatpush1.bf16.msra.mxu0 %v82
    %102 = vmatprep.subr.bf16.mxu0 0
    %103 = vmatpush1.bf16.msra.mxu0 %v81
    %104 = vmatprep.subr.bf16.mxu0 0
    %105 = vmatpush1.bf16.msra.mxu0 %v80
    %106 = vmatprep.subr.bf16.mxu0 0
    %107 = vmatpush1.bf16.msra.mxu0 %v79
    %108 = vmatprep.subr.bf16.mxu0 0
    %109 = vmatpush1.bf16.msra.mxu0 %v78
    %110 = vmatprep.subr.bf16.mxu0 0
    %111 = vmatpush2.bf16.msra.mxu0 0
    %112 = vmatprep.subr.bf16.mxu0 0
    %113 = vmatpush2.bf16.msra.mxu0 0
    %114 = vmatprep.subr.bf16.mxu0 0
    %115 = vmatpush2.bf16.msra.mxu0 0
    %116 = vmatprep.subr.bf16.mxu0 0
    %117 = vmatpush2.bf16.msra.mxu0 0
    %118 = vmatprep.subr.bf16.mxu0 0
    %119 = vmatpush2.bf16.msra.mxu0 0
    %120 = vmatprep.subr.bf16.mxu0 0
    %121 = vmatpush2.bf16.msra.mxu0 0
    %122 = vmatprep.subr.bf16.mxu0 0
    %123 = vmatpush2.bf16.msra.mxu0 0
    %124 = vmatprep.subr.bf16.mxu0 0
    %125 = vmatpush2.bf16.msra.mxu0 0
    %126 = vmatprep.mubr.bf16.mxu0 0
    %127 = vmatmul.mubr.bf16.gmra.mxu0 %v44
    %v128 = vpop.f32.mrf.mxu0
    %v129 = vadd.f32 0.0, %v128
    %v130 = vpop.f32.mrf.mxu0
    %v131 = vpop.f32.mrf.mxu0
    %v132 = vadd.f32 0.0, %v131
    %v133 = vpop.f32.mrf.mxu0
    %134 = vdwg.mxu0
    %v135 = vpack.c.bf16 %v132, %v129
    %v137 = vunpack.c.l.b16 %v135
    %v138 = vunpack.c.h.b16 %v135
    %v139 = vpack.c.b16 %v137, %v137
    %v140 = vpack.c.b16 %v138, %v138
    %143 = vst [vmem:[#allocation2] sm:$0xf] %v139
    %144 = vst [vmem:[#allocation2 + $0x4] sm:$0xf] %v140
    %v145 = vld [vmem:[%s2] sm:$0xf]
    %v146 = vld [vmem:[%s2 + $0x4] sm:$0xf]
    %v149 = vunpack.c.l.b16 %v145
    %v150 = vunpack.c.l.b16 %v146
    %v151 = vpack.c.b16 %v150, %v149
    %153 = vmatprep.subr.bf16.mxu0 0
    %154 = vmatpush1.bf16.msra.mxu0 %v85
    %155 = vmatprep.subr.bf16.mxu0 0
    %156 = vmatpush1.bf16.msra.mxu0 %v84
    %157 = vmatprep.subr.bf16.mxu0 0
    %158 = vmatpush1.bf16.msra.mxu0 %v83
    %159 = vmatprep.subr.bf16.mxu0 0
    %160 = vmatpush1.bf16.msra.mxu0 %v82
    %161 = vmatprep.subr.bf16.mxu0 0
    %162 = vmatpush1.bf16.msra.mxu0 %v81
    %163 = vmatprep.subr.bf16.mxu0 0
    %164 = vmatpush1.bf16.msra.mxu0 %v80
    %165 = vmatprep.subr.bf16.mxu0 0
    %166 = vmatpush1.bf16.msra.mxu0 %v79
    %167 = vmatprep.subr.bf16.mxu0 0
    %168 = vmatpush1.bf16.msra.mxu0 %v78
    %169 = vmatprep.subr.bf16.mxu0 0
    %170 = vmatpush2.bf16.msra.mxu0 0
    %171 = vmatprep.subr.bf16.mxu0 0
    %172 = vmatpush2.bf16.msra.mxu0 0
    %173 = vmatprep.subr.bf16.mxu0 0
    %174 = vmatpush2.bf16.msra.mxu0 0
    %175 = vmatprep.subr.bf16.mxu0 0
    %176 = vmatpush2.bf16.msra.mxu0 0
    %177 = vmatprep.subr.bf16.mxu0 0
    %178 = vmatpush2.bf16.msra.mxu0 0
    %179 = vmatprep.subr.bf16.mxu0 0
    %180 = vmatpush2.bf16.msra.mxu0 0
    %181 = vmatprep.subr.bf16.mxu0 0
    %182 = vmatpush2.bf16.msra.mxu0 0
    %183 = vmatprep.subr.bf16.mxu0 0
    %184 = vmatpush2.bf16.msra.mxu0 0
    %185 = vmatprep.mubr.bf16.mxu0 0
    %186 = vmatmul.mubr.bf16.gmra.mxu0 %v151
    %v187 = vpop.f32.mrf.mxu0
    %v188 = vadd.f32 0.0, %v187
    %v189 = vpop.f32.mrf.mxu0
    %v190 = vpop.f32.mrf.mxu0
    %v191 = vadd.f32 0.0, %v190
    %v192 = vpop.f32.mrf.mxu0
    %193 = vdwg.mxu0
    %v194 = vpack.c.bf16 %v191, %v188
    %v196 = vunpack.c.l.b16 %v194
    %v197 = vunpack.c.h.b16 %v194
    %v198 = vpack.c.b16 %v196, %v196
    %v199 = vpack.c.b16 %v197, %v197
    %202 = vst [vmem:[#allocation4] sm:$0xf] %v198
    %203 = vst [vmem:[#allocation4 + $0x4] sm:$0xf] %v199
    // Predicated region
    $region14: #{_zack_pallas_forward.3} parent=1 // pred_check
      _
    $region15: #{_zack_pallas_forward.3} parent=1 // pred_check_branch
      %205 = sbr.rel (0) target = $region17
    $region16: #{_zack_pallas_forward.3} parent=1 // pred_region
      %s207 = ssub.s32 128, 128
      %208 = vsyncadd [#allocation3], %s207
      %s209 = sshll.u32 [#allocation2], 4
      %s210 = int_to_ptr.vmem [resolvable:$true] %s209
      %215 = dma.vmem_to_hbm [thread:$0]  %s210, 128, %s3, [#allocation3], 64, 64, 4
    $region17: #{_zack_pallas_forward.3} parent=1 // pred_fallthru
      _
    // Predicated region
    $region18: #{_zack_pallas_forward.3} parent=1 // pred_check
      _
    $region19: #{_zack_pallas_forward.3} parent=1 // pred_check_branch
      %217 = sbr.rel (0) target = $region21
    $region20: #{_zack_pallas_forward.3} parent=1 // pred_region
      %s219 = ssub.s32 128, 128
      %220 = vsyncadd [#allocation5], %s219
      %s221 = sshll.u32 [#allocation4], 4
      %s222 = int_to_ptr.vmem [resolvable:$true] %s221
      %227 = dma.vmem_to_hbm [thread:$0]  %s222, 128, %s4, [#allocation5], 64, 64, 4
    $region21: #{_zack_pallas_forward.3} parent=1 // pred_fallthru
      _
    // Predicated region
    $region22: #{_zack_pallas_forward.3} parent=1 // pred_check
      _
    $region23: #{_zack_pallas_forward.3} parent=1 // pred_check_branch
      %229 = sbr.rel (0) target = $region25
    $region24: #{_zack_pallas_forward.3} parent=1 // pred_region
      %230 = dma.done [#allocation3], 128
    $region25: #{_zack_pallas_forward.3} parent=1 // pred_fallthru
      _
    // Predicated region
    $region26: #{_zack_pallas_forward.3} parent=1 // pred_check
      _
    $region27: #{_zack_pallas_forward.3} parent=1 // pred_check_branch
      %232 = sbr.rel (0) target = $region29
    $region28: #{_zack_pallas_forward.3} parent=1 // pred_region
      %233 = dma.done [#allocation5], 128
    $region29: #{_zack_pallas_forward.3} parent=1 // pred_fallthru
      _
    %234 = vsyncpa [#allocation3], 1
    %235 = vsyncpa [#allocation5], 1

</llo_original>
